<compile_context>
chip_gen: v6e
topology: v6e:2x2x1
jax: 0.10.0
libtpu: 0.0.40
codegen_flags: <defaults>
</compile_context>

<pallas_src>
import math
import functools

import jax
import jax.numpy as jnp
from jax.experimental import pallas as pl
from jax.experimental.pallas import tpu as pltpu


def _perturb_adj_kernel(params_ref, adj_ref, u_ref, out_ref):
    # params_ref (SMEM, f32[2]): [p2, 1 - p1 - p2]
    p2 = params_ref[0]
    c = params_ref[1]
    adj = adj_ref[...]                      # (tile_m, N) f32
    # prob = adj*(1-p1) + (1-adj)*p2  ==  p2 + adj*(1 - p1 - p2)
    prob = adj * c + p2
    # Bernoulli(prob): uniform[0,1) < prob
    out_ref[...] = (u_ref[...] < prob).astype(out_ref.dtype)
    # TODO(synk): the reference also computes triu(adj_ptb).sum() + triu(adj_ptb).T
    # and discards the result (no side effect), so it is intentionally omitted.


def _pick_tile_m(n: int) -> int:
    """Largest row-tile that divides n, is a multiple of 8, and keeps a
    (tile_m, n) f32 block at <= ~4 MiB so 3 arrays x 2 pipeline buffers stay
    well under the 32 MiB scoped-VMEM default (and v7x's 64 MiB physical)."""
    max_rows = max(8, (4 * 1024 * 1024) // max(1, n * 4))
    for cand in (1024, 512, 256, 128, 64, 32, 16, 8):
        if cand <= max_rows and n % cand == 0:
            return cand
    return n  # small / odd N: fall back to a single full block


def perturb_adj(adj: jax.Array, key: jax.Array, gamma: float = 1.0) -> jax.Array:
    n = adj.shape[0]
    assert adj.shape == (n, n)
    adj = adj.astype(jnp.float32)

    # ---- scalar math hoisted out of the kernel (one XLA reduce pass) ----
    # NOTE: f32 accumulation is exact only while the edge count < ~2^24;
    # fine at these sizes.
    total = jnp.sum(adj, dtype=jnp.float32)
    ne = jnp.floor(total * jnp.float32(0.5))
    nu = jnp.float32(n * (n - 1) / 2.0)
    denom = jnp.float32(math.exp(gamma)) * ne + nu
    p1 = nu / denom
    p2 = ne / denom
    params = jnp.stack([p2, jnp.float32(1.0) - p1 - p2]).astype(jnp.float32)

    # Uniform randoms generated wrapper-side (hardware PRNG has no
    # CPU/interpret lowering); streamed tile-by-tile like adj.
    uniform = jax.random.uniform(key, (n, n), dtype=jnp.float32)

    tile_m = _pick_tile_m(n)
    grid = (n // tile_m,)

    row_spec = pl.BlockSpec((tile_m, n), lambda i: (i, 0))

    return pl.pallas_call(
        _perturb_adj_kernel,
        out_shape=jax.ShapeDtypeStruct((n, n), adj.dtype),
        grid=grid,
        in_specs=[
            pl.BlockSpec(memory_space=pltpu.MemorySpace.SMEM),  # [p2, 1-p1-p2]
            row_spec,                                           # adj tile
            row_spec,                                           # uniform tile
        ],
        out_specs=row_spec,
        compiler_params=pltpu.CompilerParams(
            dimension_semantics=("parallel",),
        ),
    )(params, adj, uniform)


if __name__ == "__main__":
    N = 128
    key = jax.random.PRNGKey(0)
    k_adj, k_bern = jax.random.split(key)

    # Deterministic symmetric 0/1 adjacency with empty diagonal.
    raw = jax.random.bernoulli(k_adj, p=0.1, shape=(N, N)).astype(jnp.float32)
    upper = jnp.triu(raw, k=1)
    adj = upper + upper.T

    out = perturb_adj(adj, k_bern, gamma=1.0)
    out = jax.block_until_ready(out)

    assert out.shape == (N, N)
    assert out.dtype == jnp.float32
    # Output must be 0/1 valued.
    assert bool(jnp.all((out == 0.0) | (out == 1.0)))
    print("KERNEL_OK")
</pallas_src>

<mosaic_0001>
module attributes {stable_mosaic.version = 11 : i64} {
  func.func @_perturb_adj_kernel(%arg0: i32, %arg1: memref<2xf32, #tpu.memory_space<smem>>, %arg2: memref<128x128xf32, #tpu.memory_space<vmem>>, %arg3: memref<128x128xf32, #tpu.memory_space<vmem>>, %arg4: memref<128x128xf32, #tpu.memory_space<vmem>>) attributes {dimension_semantics = [#tpu.dimension_semantics<parallel>], iteration_bounds = array<i64: 1>, scalar_prefetch = 0 : i64, scratch_operands = 0 : i64, tpu.core_type = #tpu.core_type<tc>, window_params = [{transform_indices = @transform_0, window_bounds = array<i64: 2>}, {transform_indices = @transform_1, window_bounds = array<i64: 128, 128>}, {transform_indices = @transform_2, window_bounds = array<i64: 128, 128>}, {transform_indices = @transform_3, window_bounds = array<i64: 128, 128>}]} {
    %c0 = arith.constant 0 : index
    %0 = memref.load %arg1[%c0] : memref<2xf32, #tpu.memory_space<smem>>
    %c1 = arith.constant 1 : index
    %1 = memref.load %arg1[%c1] : memref<2xf32, #tpu.memory_space<smem>>
    %c0_0 = arith.constant 0 : index
    %c0_1 = arith.constant 0 : index
    %2 = vector.load %arg2[%c0_0, %c0_1] : memref<128x128xf32, #tpu.memory_space<vmem>>, vector<128x128xf32>
    %3 = vector.broadcast %1 : f32 to vector<128x128xf32>
    %4 = arith.mulf %2, %3 : vector<128x128xf32>
    %5 = vector.broadcast %0 : f32 to vector<128x128xf32>
    %6 = arith.addf %4, %5 : vector<128x128xf32>
    %c0_2 = arith.constant 0 : index
    %c0_3 = arith.constant 0 : index
    %7 = vector.load %arg3[%c0_2, %c0_3] : memref<128x128xf32, #tpu.memory_space<vmem>>, vector<128x128xf32>
    %8 = arith.cmpf olt, %7, %6 : vector<128x128xf32>
    %9 = arith.extui %8 : vector<128x128xi1> to vector<128x128xi32>
    %10 = arith.sitofp %9 : vector<128x128xi32> to vector<128x128xf32>
    %c0_4 = arith.constant 0 : index
    %c0_5 = arith.constant 0 : index
    %11 = vector.load %arg4[%c0_4, %c0_5] : memref<128x128xf32, #tpu.memory_space<vmem>>, vector<128x128xf32>
    tpu.vector_store %arg4[%c0_4, %c0_5], %10 {strides = array<i32>} : memref<128x128xf32, #tpu.memory_space<vmem>>, vector<128x128xf32>,
    return
  }
  func.func @transform_0(%arg0: i32) -> i32 {
    %c0_i32 = arith.constant 0 : i32
    %c0_i32_0 = arith.constant 0 : i32
    return %c0_i32 : i32
  }
  func.func @transform_1(%arg0: i32) -> (i32, i32) {
    %c0_i32 = arith.constant 0 : i32
    %c0_i32_0 = arith.constant 0 : i32
    return %arg0, %c0_i32 : i32, i32
  }
  func.func @transform_2(%arg0: i32) -> (i32, i32) {
    %c0_i32 = arith.constant 0 : i32
    %c0_i32_0 = arith.constant 0 : i32
    return %arg0, %c0_i32 : i32, i32
  }
  func.func @transform_3(%arg0: i32) -> (i32, i32) {
    %c0_i32 = arith.constant 0 : i32
    %c0_i32_0 = arith.constant 0 : i32
    return %arg0, %c0_i32 : i32, i32
  }
}

</mosaic_0001>

<llo_original>
// kernel: tpu_custom_call.1
$region0: #{tpu_custom_call.1}
  #allocation0 [shape = 'u32[]', space=smem, size = 0x4, offset = 0x4, fixed_abs, tag = 'smem constant byte address 0x4 - core index']
  #allocation1 [shape = 'u32[144,128]{1,0:T(1,128)}', space=vmem, size = 0x12000, scoped, tag = 'internal scratch']
  %s0 = inlined_call_operand.hbm [shape: f32[2], index: 0, kind: input, shape index: {}]
  %s1 = inlined_call_operand.hbm [shape: f32[128,128], index: 1, kind: input, shape index: {}]
  %s2 = inlined_call_operand.hbm [shape: f32[128,128], index: 2, kind: input, shape index: {}]
  %s3 = inlined_call_operand.hbm [shape: f32[128,128], index: 3, kind: output, shape index: {}]
  %s4 = sld [smem:[#allocation0]]
  $region34: #{tpu_custom_call.1} parent=0
    _
  %s6 = ssub.s32 1, %s4
  %s7 = scalar_select 0, %s6, %s4
  $region1: #{tpu_custom_call.1} parent=0
    #allocation2 [shape = 'u8[512]{0}', space=smem, size = 0x200, scoped, tag = 'input window, operand 0, single buffered']
    #allocation3 [shape = 's32[1]{0}', space=sflag, size = 0x4, scoped, tag = 'scoped memory for tpu_custom_call.1']
    #allocation4 [shape = 's32[1]{0}', space=sflag, size = 0x4, scoped, tag = 'scoped memory for tpu_custom_call.1']
    #allocation5 [shape = 's32[1]{0}', space=sflag, size = 0x4, scoped, tag = 'scoped memory for tpu_custom_call.1']
    #allocation6 [shape = 'u8[65536]{0}', space=vmem, size = 0x10000, scoped, tag = 'input window, operand 1, single buffered']
    #allocation7 [shape = 'u8[65536]{0}', space=vmem, size = 0x10000, scoped, tag = 'input window, operand 2, single buffered']
    #allocation8 [shape = 's32[1]{0}', space=sflag, size = 0x4, scoped, tag = 'scoped memory for tpu_custom_call.1']
    #allocation9 [shape = 'u8[65536]{0}', space=vmem, size = 0x10000, scoped, tag = 'output window, operand 0, single buffered']
    %8 = vsyncpa [#allocation5], 0
    %9 = vsyncpa [#allocation3], 0
    %10 = vsyncpa [#allocation8], 0
    %11 = vsyncpa [#allocation4], 0
    // Predicated region
    $region2: #{tpu_custom_call.1} parent=1 // pred_check
      _
    $region3: #{tpu_custom_call.1} parent=1 // pred_check_branch
      %13 = sbr.rel (0) target = $region5
    $region4: #{tpu_custom_call.1} parent=1 // pred_region
      %s15 = ssub.s32 16, 16
      %16 = vsyncadd [#allocation5], %s15
      %19 = dma.hbm_to_smem %s0, 16, [#allocation2], [#allocation5]
    $region5: #{tpu_custom_call.1} parent=1 // pred_fallthru
      _
    // Predicated region
    $region6: #{tpu_custom_call.1} parent=1 // pred_check
      _
    $region7: #{tpu_custom_call.1} parent=1 // pred_check_branch
      %21 = sbr.rel (0) target = $region9
    $region8: #{tpu_custom_call.1} parent=1 // pred_region
      %s23 = ssub.s32 2048, 2048
      %24 = vsyncadd [#allocation3], %s23
      %s25 = sshll.u32 [#allocation6], 4
      %s26 = int_to_ptr.vmem [resolvable:$true] %s25
      %31 = dma.hbm_to_vmem [thread:$0]  %s1, 2048, %s26, [#allocation3], 128, 128, 8
    $region9: #{tpu_custom_call.1} parent=1 // pred_fallthru
      _
    // Predicated region
    $region10: #{tpu_custom_call.1} parent=1 // pred_check
      _
    $region11: #{tpu_custom_call.1} parent=1 // pred_check_branch
      %33 = sbr.rel (0) target = $region13
    $region12: #{tpu_custom_call.1} parent=1 // pred_region
      %s35 = ssub.s32 2048, 2048
      %36 = vsyncadd [#allocation8], %s35
      %s37 = sshll.u32 [#allocation7], 4
      %s38 = int_to_ptr.vmem [resolvable:$true] %s37
      %43 = dma.hbm_to_vmem [thread:$0]  %s2, 2048, %s38, [#allocation8], 128, 128, 8
    $region13: #{tpu_custom_call.1} parent=1 // pred_fallthru
      _
    // Predicated region
    $region14: #{tpu_custom_call.1} parent=1 // pred_check
      _
    $region15: #{tpu_custom_call.1} parent=1 // pred_check_branch
      %45 = sbr.rel (0) target = $region17
    $region16: #{tpu_custom_call.1} parent=1 // pred_region
      %46 = dma.done [#allocation5], 16
    $region17: #{tpu_custom_call.1} parent=1 // pred_fallthru
      _
    // Predicated region
    $region18: #{tpu_custom_call.1} parent=1 // pred_check
      _
    $region19: #{tpu_custom_call.1} parent=1 // pred_check_branch
      %48 = sbr.rel (0) target = $region21
    $region20: #{tpu_custom_call.1} parent=1 // pred_region
      %49 = dma.done [#allocation3], 2048
    $region21: #{tpu_custom_call.1} parent=1 // pred_fallthru
      _
    // Predicated region
    $region22: #{tpu_custom_call.1} parent=1 // pred_check
      _
    $region23: #{tpu_custom_call.1} parent=1 // pred_check_branch
      %51 = sbr.rel (0) target = $region25
    $region24: #{tpu_custom_call.1} parent=1 // pred_region
      %52 = dma.done [#allocation8], 2048
    $region25: #{tpu_custom_call.1} parent=1 // pred_fallthru
      _
    %53 = sfence
    %s54 = sld [smem:[#allocation2]]
    %s55 = sld [smem:[#allocation2 + $0x1]]
    %v56 = vld [vmem:[#allocation6] sm:$0xff]
    %v57 = vld [vmem:[#allocation6 + $0x8] sm:$0xff]
    %v58 = vld [vmem:[#allocation6 + $0x10] sm:$0xff]
    %v59 = vld [vmem:[#allocation6 + $0x18] sm:$0xff]
    %v60 = vld [vmem:[#allocation6 + $0x20] sm:$0xff]
    %v61 = vld [vmem:[#allocation6 + $0x28] sm:$0xff]
    %v62 = vld [vmem:[#allocation6 + $0x30] sm:$0xff]
    %v63 = vld [vmem:[#allocation6 + $0x38] sm:$0xff]
    %v64 = vld [vmem:[#allocation6 + $0x40] sm:$0xff]
    %v65 = vld [vmem:[#allocation6 + $0x48] sm:$0xff]
    %v66 = vld [vmem:[#allocation6 + $0x50] sm:$0xff]
    %v67 = vld [vmem:[#allocation6 + $0x58] sm:$0xff]
    %v68 = vld [vmem:[#allocation6 + $0x60] sm:$0xff]
    %v69 = vld [vmem:[#allocation6 + $0x68] sm:$0xff]
    %v70 = vld [vmem:[#allocation6 + $0x70] sm:$0xff]
    %v71 = vld [vmem:[#allocation6 + $0x78] sm:$0xff]
    %v72 = vstv %s55
    %v73 = vmul.f32 %v56, %v72
    %v74 = vmul.f32 %v57, %v72
    %v75 = vmul.f32 %v58, %v72
    %v76 = vmul.f32 %v59, %v72
    %v77 = vmul.f32 %v60, %v72
    %v78 = vmul.f32 %v61, %v72
    %v79 = vmul.f32 %v62, %v72
    %v80 = vmul.f32 %v63, %v72
    %v81 = vmul.f32 %v64, %v72
    %v82 = vmul.f32 %v65, %v72
    %v83 = vmul.f32 %v66, %v72
    %v84 = vmul.f32 %v67, %v72
    %v85 = vmul.f32 %v68, %v72
    %v86 = vmul.f32 %v69, %v72
    %v87 = vmul.f32 %v70, %v72
    %v88 = vmul.f32 %v71, %v72
    %v89 = vstv %s54
    %v90 = vadd.f32 %v73, %v89
    %v91 = vadd.f32 %v74, %v89
    %v92 = vadd.f32 %v75, %v89
    %v93 = vadd.f32 %v76, %v89
    %v94 = vadd.f32 %v77, %v89
    %v95 = vadd.f32 %v78, %v89
    %v96 = vadd.f32 %v79, %v89
    %v97 = vadd.f32 %v80, %v89
    %v98 = vadd.f32 %v81, %v89
    %v99 = vadd.f32 %v82, %v89
    %v100 = vadd.f32 %v83, %v89
    %v101 = vadd.f32 %v84, %v89
    %v102 = vadd.f32 %v85, %v89
    %v103 = vadd.f32 %v86, %v89
    %v104 = vadd.f32 %v87, %v89
    %v105 = vadd.f32 %v88, %v89
    %v106 = vld [vmem:[#allocation7] sm:$0xff]
    %v107 = vld [vmem:[#allocation7 + $0x8] sm:$0xff]
    %v108 = vld [vmem:[#allocation7 + $0x10] sm:$0xff]
    %v109 = vld [vmem:[#allocation7 + $0x18] sm:$0xff]
    %v110 = vld [vmem:[#allocation7 + $0x20] sm:$0xff]
    %v111 = vld [vmem:[#allocation7 + $0x28] sm:$0xff]
    %v112 = vld [vmem:[#allocation7 + $0x30] sm:$0xff]
    %v113 = vld [vmem:[#allocation7 + $0x38] sm:$0xff]
    %v114 = vld [vmem:[#allocation7 + $0x40] sm:$0xff]
    %v115 = vld [vmem:[#allocation7 + $0x48] sm:$0xff]
    %v116 = vld [vmem:[#allocation7 + $0x50] sm:$0xff]
    %v117 = vld [vmem:[#allocation7 + $0x58] sm:$0xff]
    %v118 = vld [vmem:[#allocation7 + $0x60] sm:$0xff]
    %v119 = vld [vmem:[#allocation7 + $0x68] sm:$0xff]
    %v120 = vld [vmem:[#allocation7 + $0x70] sm:$0xff]
    %v121 = vld [vmem:[#allocation7 + $0x78] sm:$0xff]
    %vm122 = vcmp.lt.f32.partialorder %v106, %v90
    %vm123 = vcmp.lt.f32.partialorder %v107, %v91
    %vm124 = vcmp.lt.f32.partialorder %v108, %v92
    %vm125 = vcmp.lt.f32.partialorder %v109, %v93
    %vm126 = vcmp.lt.f32.partialorder %v110, %v94
    %vm127 = vcmp.lt.f32.partialorder %v111, %v95
    %vm128 = vcmp.lt.f32.partialorder %v112, %v96
    %vm129 = vcmp.lt.f32.partialorder %v113, %v97
    %vm130 = vcmp.lt.f32.partialorder %v114, %v98
    %vm131 = vcmp.lt.f32.partialorder %v115, %v99
    %vm132 = vcmp.lt.f32.partialorder %v116, %v100
    %vm133 = vcmp.lt.f32.partialorder %v117, %v101
    %vm134 = vcmp.lt.f32.partialorder %v118, %v102
    %vm135 = vcmp.lt.f32.partialorder %v119, %v103
    %vm136 = vcmp.lt.f32.partialorder %v120, %v104
    %vm137 = vcmp.lt.f32.partialorder %v121, %v105
    %v138 = vsel %vm122, 1, 0
    %v139 = vsel %vm123, 1, 0
    %v140 = vsel %vm124, 1, 0
    %v141 = vsel %vm125, 1, 0
    %v142 = vsel %vm126, 1, 0
    %v143 = vsel %vm127, 1, 0
    %v144 = vsel %vm128, 1, 0
    %v145 = vsel %vm129, 1, 0
    %v146 = vsel %vm130, 1, 0
    %v147 = vsel %vm131, 1, 0
    %v148 = vsel %vm132, 1, 0
    %v149 = vsel %vm133, 1, 0
    %v150 = vsel %vm134, 1, 0
    %v151 = vsel %vm135, 1, 0
    %v152 = vsel %vm136, 1, 0
    %v153 = vsel %vm137, 1, 0
    %v154 = vcvt.s32.f32 %v138
    %v155 = vcvt.s32.f32 %v139
    %v156 = vcvt.s32.f32 %v140
    %v157 = vcvt.s32.f32 %v141
    %v158 = vcvt.s32.f32 %v142
    %v159 = vcvt.s32.f32 %v143
    %v160 = vcvt.s32.f32 %v144
    %v161 = vcvt.s32.f32 %v145
    %v162 = vcvt.s32.f32 %v146
    %v163 = vcvt.s32.f32 %v147
    %v164 = vcvt.s32.f32 %v148
    %v165 = vcvt.s32.f32 %v149
    %v166 = vcvt.s32.f32 %v150
    %v167 = vcvt.s32.f32 %v151
    %v168 = vcvt.s32.f32 %v152
    %v169 = vcvt.s32.f32 %v153
    %170 = vst [vmem:[#allocation9] sm:$0xff] %v154
    %171 = vst [vmem:[#allocation9 + $0x8] sm:$0xff] %v155
    %172 = vst [vmem:[#allocation9 + $0x10] sm:$0xff] %v156
    %173 = vst [vmem:[#allocation9 + $0x18] sm:$0xff] %v157
    %174 = vst [vmem:[#allocation9 + $0x20] sm:$0xff] %v158
    %175 = vst [vmem:[#allocation9 + $0x28] sm:$0xff] %v159
    %176 = vst [vmem:[#allocation9 + $0x30] sm:$0xff] %v160
    %177 = vst [vmem:[#allocation9 + $0x38] sm:$0xff] %v161
    %178 = vst [vmem:[#allocation9 + $0x40] sm:$0xff] %v162
    %179 = vst [vmem:[#allocation9 + $0x48] sm:$0xff] %v163
    %180 = vst [vmem:[#allocation9 + $0x50] sm:$0xff] %v164
    %181 = vst [vmem:[#allocation9 + $0x58] sm:$0xff] %v165
    %182 = vst [vmem:[#allocation9 + $0x60] sm:$0xff] %v166
    %183 = vst [vmem:[#allocation9 + $0x68] sm:$0xff] %v167
    %184 = vst [vmem:[#allocation9 + $0x70] sm:$0xff] %v168
    %185 = vst [vmem:[#allocation9 + $0x78] sm:$0xff] %v169
    // Predicated region
    $region26: #{tpu_custom_call.1} parent=1 // pred_check
      _
    $region27: #{tpu_custom_call.1} parent=1 // pred_check_branch
      %187 = sbr.rel (0) target = $region29
    $region28: #{tpu_custom_call.1} parent=1 // pred_region
      %s189 = ssub.s32 2048, 2048
      %190 = vsyncadd [#allocation4], %s189
      %s191 = sshll.u32 [#allocation9], 4
      %s192 = int_to_ptr.vmem [resolvable:$true] %s191
      %197 = dma.vmem_to_hbm [thread:$0]  %s192, 2048, %s3, [#allocation4], 128, 128, 8
    $region29: #{tpu_custom_call.1} parent=1 // pred_fallthru
      _
    // Predicated region
    $region30: #{tpu_custom_call.1} parent=1 // pred_check
      _
    $region31: #{tpu_custom_call.1} parent=1 // pred_check_branch
      %199 = sbr.rel (0) target = $region33
    $region32: #{tpu_custom_call.1} parent=1 // pred_region
      %200 = dma.done [#allocation4], 2048
    $region33: #{tpu_custom_call.1} parent=1 // pred_fallthru
      _
    %201 = vsyncpa [#allocation3], 1
    %202 = vsyncpa [#allocation8], 1
    %203 = vsyncpa [#allocation4], 1
    %204 = vsyncpa [#allocation5], 1

</llo_original>
